<compile_context>
chip_gen: v6e
topology: v6e:2x2x1
jax: 0.10.0
libtpu: 0.0.40
codegen_flags: <defaults>
</compile_context>

<pallas_src>
import functools
import math

import jax
import jax.numpy as jnp
from jax.experimental import pallas as pl
from jax.experimental.pallas import tpu as pltpu


def _round_up(n, mult):
    return ((n + mult - 1) // mult) * mult


def _gelu(x):
    # TODO(synk): PyTorch nn.GELU default is the exact erf-based GELU; we use the
    # tanh approximation (abs err < ~1e-3) since erf lowering is not guaranteed on
    # Mosaic. tanh rides the EUP slot; x*x hoisted so the polynomial forms as FMAs.
    c = math.sqrt(2.0 / math.pi)
    x2 = x * x
    return 0.5 * x * (1.0 + jnp.tanh(c * x * (1.0 + 0.044715 * x2)))


def _ffr_kernel(x_ref, init_ref, w1x_ref, w1i_ref, b1_ref, w2_ref, b2_ref,
                out_ref, *, n_iter):
    x = x_ref[...]                                  # [TM, dim]      (native dtype)
    init = init_ref[...]                            # [TM, out_dim]  (native dtype)

    # cat([x, init], -1) @ W1  ==  x @ W1[:dim] + init @ W1[dim:]
    h = (jnp.dot(x, w1x_ref[...], preferred_element_type=jnp.float32)
         + jnp.dot(init, w1i_ref[...], preferred_element_type=jnp.float32)
         + b1_ref[...].astype(jnp.float32))         # [TM, hidden], f32
    h = _gelu(h)
    # Dropout(p=0.0) is the identity in both train and eval.
    y = (jnp.dot(h.astype(w2_ref.dtype), w2_ref[...],
                 preferred_element_type=jnp.float32)
         + b2_ref[...].astype(jnp.float32))         # [TM, out_dim], f32

    # y is iteration-invariant (xf always uses `init`), so the n_iter residual
    # loop collapses to a single fused multiply-add.
    pred = init.astype(jnp.float32) + jnp.float32(n_iter) * y
    out_ref[...] = pred.astype(out_ref.dtype)


def feed_forward_residual(x, init, params, n_iter=1, block_rows=4096):
    """x: [..., dim], init: [..., out_dim] -> [..., out_dim]"""
    w1x, w1i, b1, w2, b2 = params
    dim = x.shape[-1]
    hidden = w1x.shape[-1]
    out_dim = init.shape[-1]
    lead = x.shape[:-1]
    assert init.shape[:-1] == lead
    assert block_rows % 8 == 0
    m = int(math.prod(lead)) if lead else 1

    x2 = x.reshape(m, dim)
    init2 = init.reshape(m, out_dim)

    # Row tile: multiple of 8 sublanes, capped by block_rows, and capped at
    # ceil(m/2) so the grid has >= 2 steps (keeps both v7x TensorCores busy;
    # harmless on v5e/v6e).  No whole-array padding: the grid is pl.cdiv(m, tm)
    # and Pallas handles the trailing partial block (OOB writes are masked; the
    # garbage rows only feed compute whose results are discarded).
    tm = min(block_rows, max(8, _round_up(pl.cdiv(m, 2), 8)))
    grid = (pl.cdiv(m, tm),)

    # Explicit VMEM budget: double-buffered row tiles (x, init, out) +
    # double-buffered resident weights + the f32 hidden temp + headroom.
    itemsize = max(jnp.dtype(x.dtype).itemsize, 4)
    tile_bytes = tm * (dim + 2 * out_dim) * itemsize
    weight_bytes = 4 * (w1x.size + w1i.size + b1.size + w2.size + b2.size)
    vmem_est = 2 * tile_bytes + 2 * weight_bytes + tm * hidden * 4 + (2 << 20)
    vmem_limit = int(min(48 * 1024 * 1024, max(32 * 1024 * 1024, vmem_est)))

    def row_spec(cols):
        return pl.BlockSpec((tm, cols), lambda i: (i, 0))

    def resident_spec(arr):
        # Same block index for every grid step -> DMA'd once, stays in VMEM.
        return pl.BlockSpec(arr.shape, lambda i: (0, 0))

    out = pl.pallas_call(
        functools.partial(_ffr_kernel, n_iter=n_iter),
        out_shape=jax.ShapeDtypeStruct((m, out_dim), x.dtype),
        grid=grid,
        in_specs=[row_spec(dim), row_spec(out_dim),
                  resident_spec(w1x), resident_spec(w1i), resident_spec(b1),
                  resident_spec(w2), resident_spec(b2)],
        out_specs=row_spec(out_dim),
        compiler_params=pltpu.CompilerParams(
            dimension_semantics=("parallel",),
            vmem_limit_bytes=vmem_limit),
    )(x2, init2, w1x, w1i, b1, w2, b2)

    return out.reshape(*lead, out_dim)


def init_params(key, dim, hidden_dim, out_dim):
    """Deterministic parameter init matching the torch module's shapes.

    Linear1: default PyTorch init (uniform +-1/sqrt(fan_in)).
    Linear2: weight = xavier_uniform(gain=0.01), bias = default uniform.
    Weights are stored as [in, out] (transposed w.r.t. torch's [out, in]).
    """
    k1, k2, k3, k4 = jax.random.split(key, 4)
    in1 = dim + out_dim
    bound1 = 1.0 / math.sqrt(in1)
    w1 = jax.random.uniform(k1, (in1, hidden_dim), jnp.float32, -bound1, bound1)
    b1 = jax.random.uniform(k2, (1, hidden_dim), jnp.float32, -bound1, bound1)

    gain = 0.01
    bound2 = gain * math.sqrt(6.0 / (hidden_dim + out_dim))
    w2 = jax.random.uniform(k3, (hidden_dim, out_dim), jnp.float32, -bound2, bound2)
    bound2b = 1.0 / math.sqrt(hidden_dim)
    b2 = jax.random.uniform(k4, (1, out_dim), jnp.float32, -bound2b, bound2b)

    # split W1 into the x-part and the init-part (avoids an in-kernel concat)
    w1x, w1i = w1[:dim], w1[dim:]
    return (w1x, w1i, b1, w2, b2)


def reference(x, init, params, n_iter=1):
    w1x, w1i, b1, w2, b2 = params
    h = _gelu(x @ w1x + init @ w1i + b1)
    y = h @ w2 + b2
    pred = init
    for _ in range(n_iter):
        pred = pred + y
    return pred


if __name__ == "__main__":
    DIM = 32             # feature dim of x
    HIDDEN = 64          # hidden_dim
    OUT_DIM = 24 * 6     # out_dim = 144

    key = jax.random.PRNGKey(0)
    kx, ki, kp, kx2, ki2 = jax.random.split(key, 5)
    params = init_params(kp, DIM, HIDDEN, OUT_DIM)

    # Test 1: small shape, default tile (tm capped to ceil(m/2)=8 -> grid=(2,)).
    B, S = 2, 8
    x = jax.random.normal(kx, (B, S, DIM), jnp.float32)
    init = jax.random.normal(ki, (B, S, OUT_DIM), jnp.float32)
    out = feed_forward_residual(x, init, params, n_iter=1)
    out = jax.block_until_ready(out)
    ref = reference(x.reshape(-1, DIM), init.reshape(-1, OUT_DIM), params,
                    n_iter=1).reshape(B, S, OUT_DIM)
    assert out.shape == (B, S, OUT_DIM)
    assert jnp.allclose(out, ref, atol=1e-5, rtol=1e-5), \
        float(jnp.max(jnp.abs(out - ref)))

    # Test 2: ragged row count + partial trailing block + n_iter > 1.
    # m = 111 rows, block_rows=64 -> tm = 56, grid = (2,), last block 55 valid rows.
    B2, S2 = 3, 37
    x_b = jax.random.normal(kx2, (B2, S2, DIM), jnp.float32)
    init_b = jax.random.normal(ki2, (B2, S2, OUT_DIM), jnp.float32)
    out_b = feed_forward_residual(x_b, init_b, params, n_iter=3, block_rows=64)
    out_b = jax.block_until_ready(out_b)
    ref_b = reference(x_b.reshape(-1, DIM), init_b.reshape(-1, OUT_DIM), params,
                      n_iter=3).reshape(B2, S2, OUT_DIM)
    assert out_b.shape == (B2, S2, OUT_DIM)
    assert jnp.allclose(out_b, ref_b, atol=1e-4, rtol=1e-4), \
        float(jnp.max(jnp.abs(out_b - ref_b)))

    print("KERNEL_OK")
</pallas_src>

<mosaic_0001>
module attributes {stable_mosaic.version = 11 : i64} {
  func.func @_ffr_kernel(%arg0: i32, %arg1: memref<8x32xf32, #tpu.memory_space<vmem>>, %arg2: memref<8x144xf32, #tpu.memory_space<vmem>>, %arg3: memref<32x64xf32, #tpu.memory_space<vmem>>, %arg4: memref<144x64xf32, #tpu.memory_space<vmem>>, %arg5: memref<1x64xf32, #tpu.memory_space<vmem>>, %arg6: memref<64x144xf32, #tpu.memory_space<vmem>>, %arg7: memref<1x144xf32, #tpu.memory_space<vmem>>, %arg8: memref<8x144xf32, #tpu.memory_space<vmem>>) attributes {dimension_semantics = [#tpu.dimension_semantics<parallel>], iteration_bounds = array<i64: 2>, scalar_prefetch = 0 : i64, scratch_operands = 0 : i64, tpu.core_type = #tpu.core_type<tc>, window_params = [{transform_indices = @transform_0, window_bounds = array<i64: 8, 32>}, {transform_indices = @transform_1, window_bounds = array<i64: 8, 144>}, {pipeline_mode = #tpu.pipeline_mode<synchronous>, transform_indices = @transform_2, window_bounds = array<i64: 32, 64>}, {pipeline_mode = #tpu.pipeline_mode<synchronous>, transform_indices = @transform_3, window_bounds = array<i64: 144, 64>}, {pipeline_mode = #tpu.pipeline_mode<synchronous>, transform_indices = @transform_4, window_bounds = array<i64: 1, 64>}, {pipeline_mode = #tpu.pipeline_mode<synchronous>, transform_indices = @transform_5, window_bounds = array<i64: 64, 144>}, {pipeline_mode = #tpu.pipeline_mode<synchronous>, transform_indices = @transform_6, window_bounds = array<i64: 1, 144>}, {transform_indices = @transform_7, window_bounds = array<i64: 8, 144>}]} {
    %c0 = arith.constant 0 : index
    %c0_0 = arith.constant 0 : index
    %0 = vector.load %arg1[%c0, %c0_0] : memref<8x32xf32, #tpu.memory_space<vmem>>, vector<8x32xf32>
    %c0_1 = arith.constant 0 : index
    %c0_2 = arith.constant 0 : index
    %1 = vector.load %arg2[%c0_1, %c0_2] : memref<8x144xf32, #tpu.memory_space<vmem>>, vector<8x144xf32>
    %c0_3 = arith.constant 0 : index
    %c0_4 = arith.constant 0 : index
    %2 = vector.load %arg3[%c0_3, %c0_4] : memref<32x64xf32, #tpu.memory_space<vmem>>, vector<32x64xf32>
    %cst = arith.constant dense<0.000000e+00> : vector<8x64xf32>
    %3 = tpu.matmul %0, %2, %cst {dimension_numbers = #tpu.dot_dimension_numbers<[1], [0], [0], [1], [0, 0, 1, 1], [], []>} : vector<8x32xf32>, vector<32x64xf32>, vector<8x64xf32> -> vector<8x64xf32>
    %c0_5 = arith.constant 0 : index
    %c0_6 = arith.constant 0 : index
    %4 = vector.load %arg4[%c0_5, %c0_6] : memref<144x64xf32, #tpu.memory_space<vmem>>, vector<144x64xf32>
    %cst_7 = arith.constant dense<0.000000e+00> : vector<8x64xf32>
    %5 = tpu.matmul %1, %4, %cst_7 {dimension_numbers = #tpu.dot_dimension_numbers<[1], [0], [0], [1], [0, 0, 1, 1], [], []>} : vector<8x144xf32>, vector<144x64xf32>, vector<8x64xf32> -> vector<8x64xf32>
    %6 = arith.addf %3, %5 : vector<8x64xf32>
    %c0_8 = arith.constant 0 : index
    %c0_9 = arith.constant 0 : index
    %7 = vector.load %arg5[%c0_8, %c0_9] : memref<1x64xf32, #tpu.memory_space<vmem>>, vector<1x64xf32>
    %8 = vector.broadcast %7 : vector<1x64xf32> to vector<8x64xf32>
    %9 = arith.addf %6, %8 : vector<8x64xf32>
    %10 = arith.mulf %9, %9 : vector<8x64xf32>
    %cst_10 = arith.constant 5.000000e-01 : f32
    %11 = vector.broadcast %cst_10 : f32 to vector<8x64xf32>
    %12 = arith.mulf %11, %9 : vector<8x64xf32>
    %cst_11 = arith.constant 0.797884583 : f32
    %13 = vector.broadcast %cst_11 : f32 to vector<8x64xf32>
    %14 = arith.mulf %13, %9 : vector<8x64xf32>
    %cst_12 = arith.constant 4.471500e-02 : f32
    %15 = vector.broadcast %cst_12 : f32 to vector<8x64xf32>
    %16 = arith.mulf %15, %10 : vector<8x64xf32>
    %cst_13 = arith.constant 1.000000e+00 : f32
    %17 = vector.broadcast %cst_13 : f32 to vector<8x64xf32>
    %18 = arith.addf %17, %16 : vector<8x64xf32>
    %19 = arith.mulf %14, %18 : vector<8x64xf32>
    %20 = math.tanh %19 : vector<8x64xf32>
    %cst_14 = arith.constant 1.000000e+00 : f32
    %21 = vector.broadcast %cst_14 : f32 to vector<8x64xf32>
    %22 = arith.addf %21, %20 : vector<8x64xf32>
    %23 = arith.mulf %12, %22 : vector<8x64xf32>
    %c0_15 = arith.constant 0 : index
    %c0_16 = arith.constant 0 : index
    %24 = vector.load %arg6[%c0_15, %c0_16] : memref<64x144xf32, #tpu.memory_space<vmem>>, vector<64x144xf32>
    %cst_17 = arith.constant dense<0.000000e+00> : vector<8x144xf32>
    %25 = tpu.matmul %23, %24, %cst_17 {dimension_numbers = #tpu.dot_dimension_numbers<[1], [0], [0], [1], [0, 0, 1, 1], [], []>} : vector<8x64xf32>, vector<64x144xf32>, vector<8x144xf32> -> vector<8x144xf32>
    %c0_18 = arith.constant 0 : index
    %c0_19 = arith.constant 0 : index
    %26 = vector.load %arg7[%c0_18, %c0_19] : memref<1x144xf32, #tpu.memory_space<vmem>>, vector<1x144xf32>
    %27 = vector.broadcast %26 : vector<1x144xf32> to vector<8x144xf32>
    %28 = arith.addf %25, %27 : vector<8x144xf32>
    %cst_20 = arith.constant 1.000000e+00 : f32
    %29 = vector.broadcast %cst_20 : f32 to vector<8x144xf32>
    %30 = arith.mulf %29, %28 : vector<8x144xf32>
    %31 = arith.addf %1, %30 : vector<8x144xf32>
    %c0_21 = arith.constant 0 : index
    %c0_22 = arith.constant 0 : index
    %32 = vector.load %arg8[%c0_21, %c0_22] : memref<8x144xf32, #tpu.memory_space<vmem>>, vector<8x144xf32>
    tpu.vector_store %arg8[%c0_21, %c0_22], %31 {strides = array<i32>} : memref<8x144xf32, #tpu.memory_space<vmem>>, vector<8x144xf32>,
    return
  }
  func.func @transform_0(%arg0: i32) -> (i32, i32) {
    %c0_i32 = arith.constant 0 : i32
    %c0_i32_0 = arith.constant 0 : i32
    return %arg0, %c0_i32 : i32, i32
  }
  func.func @transform_1(%arg0: i32) -> (i32, i32) {
    %c0_i32 = arith.constant 0 : i32
    %c0_i32_0 = arith.constant 0 : i32
    return %arg0, %c0_i32 : i32, i32
  }
  func.func @transform_2(%arg0: i32) -> (i32, i32) {
    %c0_i32 = arith.constant 0 : i32
    %c0_i32_0 = arith.constant 0 : i32
    %c0_i32_1 = arith.constant 0 : i32
    return %c0_i32, %c0_i32_0 : i32, i32
  }
  func.func @transform_3(%arg0: i32) -> (i32, i32) {
    %c0_i32 = arith.constant 0 : i32
    %c0_i32_0 = arith.constant 0 : i32
    %c0_i32_1 = arith.constant 0 : i32
    return %c0_i32, %c0_i32_0 : i32, i32
  }
  func.func @transform_4(%arg0: i32) -> (i32, i32) {
    %c0_i32 = arith.constant 0 : i32
    %c0_i32_0 = arith.constant 0 : i32
    %c0_i32_1 = arith.constant 0 : i32
    return %c0_i32, %c0_i32_0 : i32, i32
  }
  func.func @transform_5(%arg0: i32) -> (i32, i32) {
    %c0_i32 = arith.constant 0 : i32
    %c0_i32_0 = arith.constant 0 : i32
    %c0_i32_1 = arith.constant 0 : i32
    return %c0_i32, %c0_i32_0 : i32, i32
  }
  func.func @transform_6(%arg0: i32) -> (i32, i32) {
    %c0_i32 = arith.constant 0 : i32
    %c0_i32_0 = arith.constant 0 : i32
    %c0_i32_1 = arith.constant 0 : i32
    return %c0_i32, %c0_i32_0 : i32, i32
  }
  func.func @transform_7(%arg0: i32) -> (i32, i32) {
    %c0_i32 = arith.constant 0 : i32
    %c0_i32_0 = arith.constant 0 : i32
    return %arg0, %c0_i32 : i32, i32
  }
}

</mosaic_0001>

<llo_original>
// kernel: tpu_custom_call.1
$region0: #{tpu_custom_call.1}
  #allocation0 [shape = 'u32[]', space=smem, size = 0x4, offset = 0x4, fixed_abs, tag = 'smem constant byte address 0x4 - core index']
  #allocation1 [shape = 'u32[144,128]{1,0:T(1,128)}', space=vmem, size = 0x12000, scoped, tag = 'internal scratch']
  %s0 = inlined_call_operand.vmem [shape: f32[16,32], index: 0, kind: input, shape index: {}]
  %s1 = inlined_call_operand.vmem [shape: f32[16,144], index: 1, kind: input, shape index: {}]
  %s2 = inlined_call_operand.vmem [shape: f32[32,64], index: 2, kind: input, shape index: {}]
  %s3 = inlined_call_operand.vmem [shape: f32[144,64], index: 3, kind: input, shape index: {}]
  %s4 = inlined_call_operand.vmem [shape: f32[1,64], index: 4, kind: input, shape index: {}]
  %s5 = inlined_call_operand.vmem [shape: f32[64,144], index: 5, kind: input, shape index: {}]
  %s6 = inlined_call_operand.vmem [shape: f32[1,144], index: 6, kind: input, shape index: {}]
  %s7 = inlined_call_operand.hbm [shape: f32[16,144], index: 7, kind: output, shape index: {}]
  %s8 = sld [smem:[#allocation0]]
  $region61: #{tpu_custom_call.1} parent=0
    _
  %s10 = ssub.s32 1, %s8
  %s11 = scalar_select 0, %s10, %s8
  $region1: #{tpu_custom_call.1} parent=0
    #allocation2 [shape = 'u8[16384]{0}', space=vmem, size = 0x4000, scoped, tag = 'output window, operand 0']
    #allocation3 [shape = 's32[2]{0}', space=sflag, size = 0x8, scoped, tag = 'scoped memory for tpu_custom_call.1']
    %12 = vsyncpa [#allocation3], 0
    %s13 = scalar_lea.sflag [#allocation3], 1
    %14 = vsyncpa %s13, 0
    loop: start=0, step=1, limit=4
    $region2: #{tpu_custom_call.1} parent=1 // loop_pre_header
      _
    $region3: #{tpu_custom_call.1} parent=1 // loop_header
      %s16 = sphi 0, %s20
      %p17 = scmp.ge.s32.totalorder %s16, 4
      %s26 = sphi 0, %s28
      %s29 = sphi 0, %s26
      %s30 = sphi 0, %s29
      %s46 = sphi 0, %s30
      %s52 = sphi 0, %s54
      %s55 = sphi 0, %s52
      %s56 = sphi 0, %s55
      %s72 = sphi 0, %s56
      %s76 = sphi 0, %s76
      %s78 = sphi 0, %s76
      %s79 = sphi 0, %s78
      %s93 = sphi 0, %s79
      %s97 = sphi 0, %s97
      %s99 = sphi 0, %s97
      %s100 = sphi 0, %s99
      %s114 = sphi 0, %s100
      %s118 = sphi 0, %s118
      %s120 = sphi 0, %s118
      %s121 = sphi 0, %s120
      %s135 = sphi 0, %s121
      %s139 = sphi 0, %s139
      %s141 = sphi 0, %s139
      %s142 = sphi 0, %s141
      %s156 = sphi 0, %s142
      %s160 = sphi 0, %s160
      %s162 = sphi 0, %s160
      %s163 = sphi 0, %s162
      %s177 = sphi 0, %s163
      %s183 = sphi 0, %s185
      %s186 = sphi 0, %s183
      %s187 = sphi 0, %s186
      %s203 = sphi 0, %s187
    $region4: #{tpu_custom_call.1} parent=1 // loop_header_branch
      %19 = sbr.rel (%p17) target = $region8
    $region5: #{tpu_custom_call.1} parent=1 // loop_body
      %s21 = ssub.s32 %s16, 1
      %s22 = ssub.s32 %s16, 2
      %s23 = sadd.s32 %s16, 1
      %s24 = ssub.s32 %s16, %s23
      %p25 = scmp.eq.s32.totalorder %s24, 0
      %s27 = sadd.s32 %s26, 1
      %s28 = scalar_select %p25, %s26, %s27
      %p31 = pneg %p25
      %p32 = scmp.eq.s32.totalorder %s16, 1
      %p33 = por %p31, %p32
      %p34 = scmp.ne.s32.totalorder %s26, %s29
      %p35 = scmp.eq.s32.totalorder %s16, 0
      %p36 = por %p34, %p35
      %p37 = scmp.ne.s32.totalorder %s26, %s29
      %p38 = scmp.eq.s32.totalorder %s21, 1
      %p39 = por %p37, %p38
      %p40 = scmp.ne.s32.totalorder %s29, %s30
      %p41 = scmp.eq.s32.totalorder %s21, 0
      %p42 = por %p40, %p41
      %p43 = scmp.ne.s32.totalorder %s29, %s30
      %p44 = scmp.eq.s32.totalorder %s22, 1
      %p45 = por %p43, %p44
      %p47 = scmp.ne.s32.totalorder %s30, %s46
      %p48 = scmp.eq.s32.totalorder %s22, 0
      %p49 = por %p47, %p48
      %s50 = ssub.s32 %s16, %s23
      %p51 = scmp.eq.s32.totalorder %s50, 0
      %s53 = sadd.s32 %s52, 1
      %s54 = scalar_select %p51, %s52, %s53
      %p57 = pneg %p51
      %p58 = scmp.eq.s32.totalorder %s16, 1
      %p59 = por %p57, %p58
      %p60 = scmp.ne.s32.totalorder %s52, %s55
      %p61 = scmp.eq.s32.totalorder %s16, 0
      %p62 = por %p60, %p61
      %p63 = scmp.ne.s32.totalorder %s52, %s55
      %p64 = scmp.eq.s32.totalorder %s21, 1
      %p65 = por %p63, %p64
      %p66 = scmp.ne.s32.totalorder %s55, %s56
      %p67 = scmp.eq.s32.totalorder %s21, 0
      %p68 = por %p66, %p67
      %p69 = scmp.ne.s32.totalorder %s55, %s56
      %p70 = scmp.eq.s32.totalorder %s22, 1
      %p71 = por %p69, %p70
      %p73 = scmp.ne.s32.totalorder %s56, %s72
      %p74 = scmp.eq.s32.totalorder %s22, 0
      %p75 = por %p73, %p74
      %s77 = sadd.s32 %s76, 1
      %p80 = scmp.eq.s32.totalorder %s16, 1
      %p81 = scmp.ne.s32.totalorder %s76, %s78
      %p82 = scmp.eq.s32.totalorder %s16, 0
      %p83 = por %p81, %p82
      %p84 = scmp.ne.s32.totalorder %s76, %s78
      %p85 = scmp.eq.s32.totalorder %s21, 1
      %p86 = por %p84, %p85
      %p87 = scmp.ne.s32.totalorder %s78, %s79
      %p88 = scmp.eq.s32.totalorder %s21, 0
      %p89 = por %p87, %p88
      %p90 = scmp.ne.s32.totalorder %s78, %s79
      %p91 = scmp.eq.s32.totalorder %s22, 1
      %p92 = por %p90, %p91
      %p94 = scmp.ne.s32.totalorder %s79, %s93
      %p95 = scmp.eq.s32.totalorder %s22, 0
      %p96 = por %p94, %p95
      %s98 = sadd.s32 %s97, 1
      %p101 = scmp.eq.s32.totalorder %s16, 1
      %p102 = scmp.ne.s32.totalorder %s97, %s99
      %p103 = scmp.eq.s32.totalorder %s16, 0
      %p104 = por %p102, %p103
      %p105 = scmp.ne.s32.totalorder %s97, %s99
      %p106 = scmp.eq.s32.totalorder %s21, 1
      %p107 = por %p105, %p106
      %p108 = scmp.ne.s32.totalorder %s99, %s100
      %p109 = scmp.eq.s32.totalorder %s21, 0
      %p110 = por %p108, %p109
      %p111 = scmp.ne.s32.totalorder %s99, %s100
      %p112 = scmp.eq.s32.totalorder %s22, 1
      %p113 = por %p111, %p112
      %p115 = scmp.ne.s32.totalorder %s100, %s114
      %p116 = scmp.eq.s32.totalorder %s22, 0
      %p117 = por %p115, %p116
      %s119 = sadd.s32 %s118, 1
      %p122 = scmp.eq.s32.totalorder %s16, 1
      %p123 = scmp.ne.s32.totalorder %s118, %s120
      %p124 = scmp.eq.s32.totalorder %s16, 0
      %p125 = por %p123, %p124
      %p126 = scmp.ne.s32.totalorder %s118, %s120
      %p127 = scmp.eq.s32.totalorder %s21, 1
      %p128 = por %p126, %p127
      %p129 = scmp.ne.s32.totalorder %s120, %s121
      %p130 = scmp.eq.s32.totalorder %s21, 0
      %p131 = por %p129, %p130
      %p132 = scmp.ne.s32.totalorder %s120, %s121
      %p133 = scmp.eq.s32.totalorder %s22, 1
      %p134 = por %p132, %p133
      %p136 = scmp.ne.s32.totalorder %s121, %s135
      %p137 = scmp.eq.s32.totalorder %s22, 0
      %p138 = por %p136, %p137
      %s140 = sadd.s32 %s139, 1
      %p143 = scmp.eq.s32.totalorder %s16, 1
      %p144 = scmp.ne.s32.totalorder %s139, %s141
      %p145 = scmp.eq.s32.totalorder %s16, 0
      %p146 = por %p144, %p145
      %p147 = scmp.ne.s32.totalorder %s139, %s141
      %p148 = scmp.eq.s32.totalorder %s21, 1
      %p149 = por %p147, %p148
      %p150 = scmp.ne.s32.totalorder %s141, %s142
      %p151 = scmp.eq.s32.totalorder %s21, 0
      %p152 = por %p150, %p151
      %p153 = scmp.ne.s32.totalorder %s141, %s142
      %p154 = scmp.eq.s32.totalorder %s22, 1
      %p155 = por %p153, %p154
      %p157 = scmp.ne.s32.totalorder %s142, %s156
      %p158 = scmp.eq.s32.totalorder %s22, 0
      %p159 = por %p157, %p158
      %s161 = sadd.s32 %s160, 1
      %p164 = scmp.eq.s32.totalorder %s16, 1
      %p165 = scmp.ne.s32.totalorder %s160, %s162
      %p166 = scmp.eq.s32.totalorder %s16, 0
      %p167 = por %p165, %p166
      %p168 = scmp.ne.s32.totalorder %s160, %s162
      %p169 = scmp.eq.s32.totalorder %s21, 1
      %p170 = por %p168, %p169
      %p171 = scmp.ne.s32.totalorder %s162, %s163
      %p172 = scmp.eq.s32.totalorder %s21, 0
      %p173 = por %p171, %p172
      %p174 = scmp.ne.s32.totalorder %s162, %s163
      %p175 = scmp.eq.s32.totalorder %s22, 1
      %p176 = por %p174, %p175
      %p178 = scmp.ne.s32.totalorder %s163, %s177
      %p179 = scmp.eq.s32.totalorder %s22, 0
      %p180 = por %p178, %p179
      %s181 = ssub.s32 %s16, %s23
      %p182 = scmp.eq.s32.totalorder %s181, 0
      %s184 = sadd.s32 %s183, 1
      %s185 = scalar_select %p182, %s183, %s184
      %p188 = pneg %p182
      %p189 = scmp.eq.s32.totalorder %s16, 1
      %p190 = por %p188, %p189
      %p191 = scmp.ne.s32.totalorder %s183, %s186
      %p192 = scmp.eq.s32.totalorder %s16, 0
      %p193 = por %p191, %p192
      %p194 = scmp.ne.s32.totalorder %s183, %s186
      %p195 = scmp.eq.s32.totalorder %s21, 1
      %p196 = por %p194, %p195
      %p197 = scmp.ne.s32.totalorder %s186, %s187
      %p198 = scmp.eq.s32.totalorder %s21, 0
      %p199 = por %p197, %p198
      %p200 = scmp.ne.s32.totalorder %s186, %s187
      %p201 = scmp.eq.s32.totalorder %s22, 1
      %p202 = por %p200, %p201
      %p204 = scmp.ne.s32.totalorder %s187, %s203
      %p205 = scmp.eq.s32.totalorder %s22, 0
      %p206 = por %p204, %p205
      %p207 = scmp.le.s32.totalorder 1, %s16
      %p208 = scmp.lt.s32.totalorder %s16, 3
      %p209 = pnand %p207, %p208
      %p210 = pneg %p209
      // Predicated region
      $region9: #{tpu_custom_call.1} parent=5 // pred_check
        _
      $region10: #{tpu_custom_call.1} parent=5 // pred_check_branch
        %212 = sbr.rel (%p209) target = $region12
      $region11: #{tpu_custom_call.1} parent=5 // pred_region
        %s213 = ssub.s32 %s16, 1
        // Predicated region
        $region13: #{tpu_custom_call.1} parent=11 // pred_check
          %p214 = pneg %p89
        $region14: #{tpu_custom_call.1} parent=11 // pred_check_branch
          %216 = sbr.rel (%p214) target = $region16
        $region15: #{tpu_custom_call.1} parent=11 // pred_region
          _
        $region16: #{tpu_custom_call.1} parent=11 // pred_fallthru
          _
        // Predicated region
        $region17: #{tpu_custom_call.1} parent=11 // pred_check
          %p217 = pneg %p110
        $region18: #{tpu_custom_call.1} parent=11 // pred_check_branch
          %219 = sbr.rel (%p217) target = $region20
        $region19: #{tpu_custom_call.1} parent=11 // pred_region
          _
        $region20: #{tpu_custom_call.1} parent=11 // pred_fallthru
          _
        // Predicated region
        $region21: #{tpu_custom_call.1} parent=11 // pred_check
          %p220 = pneg %p131
        $region22: #{tpu_custom_call.1} parent=11 // pred_check_branch
          %222 = sbr.rel (%p220) target = $region24
        $region23: #{tpu_custom_call.1} parent=11 // pred_region
          _
        $region24: #{tpu_custom_call.1} parent=11 // pred_fallthru
          _
        // Predicated region
        $region25: #{tpu_custom_call.1} parent=11 // pred_check
          %p223 = pneg %p152
        $region26: #{tpu_custom_call.1} parent=11 // pred_check_branch
          %225 = sbr.rel (%p223) target = $region28
        $region27: #{tpu_custom_call.1} parent=11 // pred_region
          _
        $region28: #{tpu_custom_call.1} parent=11 // pred_fallthru
          _
        // Predicated region
        $region29: #{tpu_custom_call.1} parent=11 // pred_check
          %p226 = pneg %p173
        $region30: #{tpu_custom_call.1} parent=11 // pred_check_branch
          %228 = sbr.rel (%p226) target = $region32
        $region31: #{tpu_custom_call.1} parent=11 // pred_region
          _
        $region32: #{tpu_custom_call.1} parent=11 // pred_fallthru
          _
      $region12: #{tpu_custom_call.1} parent=5 // pred_fallthru
        _
      %p229 = scmp.lt.s32.totalorder %s16, 2
      // Predicated region
      $region33: #{tpu_custom_call.1} parent=5 // pred_check
        %p230 = pneg %p229
      $region34: #{tpu_custom_call.1} parent=5 // pred_check_branch
        %232 = sbr.rel (%p230) target = $region36
      $region35: #{tpu_custom_call.1} parent=5 // pred_region
        // Predicated region
        $region37: #{tpu_custom_call.1} parent=35 // pred_check
          %p233 = pneg %p36
        $region38: #{tpu_custom_call.1} parent=35 // pred_check_branch
          %235 = sbr.rel (%p233) target = $region40
        $region39: #{tpu_custom_call.1} parent=35 // pred_region
          %p236 = scmp.lt.s32.totalorder %s16, 1
          %s237 = scalar_select %p236, %s16, 1
          %s238 = smul.addr %s237, 8
          %s239 = scalar_lea.vmem %s0, %s238
        $region40: #{tpu_custom_call.1} parent=35 // pred_fallthru
          _
        // Predicated region
        $region41: #{tpu_custom_call.1} parent=35 // pred_check
          %p240 = pneg %p62
        $region42: #{tpu_custom_call.1} parent=35 // pred_check_branch
          %242 = sbr.rel (%p240) target = $region44
        $region43: #{tpu_custom_call.1} parent=35 // pred_region
          %p243 = scmp.lt.s32.totalorder %s16, 1
          %s244 = scalar_select %p243, %s16, 1
          %s245 = smul.addr %s244, 2
          %s246 = smul.addr %s245, 8
          %s247 = scalar_lea.vmem %s1, %s246
        $region44: #{tpu_custom_call.1} parent=35 // pred_fallthru
          _
      $region36: #{tpu_custom_call.1} parent=5 // pred_fallthru
        _
      %p248 = scmp.le.s32.totalorder 1, %s16
      %p249 = scmp.lt.s32.totalorder %s16, 3
      %p250 = pnand %p248, %p249
      %p251 = pneg %p250
      // Predicated region
      $region45: #{tpu_custom_call.1} parent=5 // pred_check
        _
      $region46: #{tpu_custom_call.1} parent=5 // pred_check_branch
        %253 = sbr.rel (%p250) target = $region48
      $region47: #{tpu_custom_call.1} parent=5 // pred_region
        %s254 = ssub.s32 %s16, 1
        %p255 = scmp.lt.s32.totalorder %s21, 1
        %s256 = scalar_select %p255, %s21, 1
        %s257 = smul.addr %s256, 8
        %s258 = scalar_lea.vmem %s0, %s257
        %p259 = pneg %p42
        %p260 = pneg %p39
        %p261 = scmp.lt.s32.totalorder %s21, 1
        %s262 = scalar_select %p261, %s21, 1
        %s263 = smul.addr %s262, 2
        %s264 = smul.addr %s263, 8
        %s265 = scalar_lea.vmem %s1, %s264
        %p266 = pneg %p68
        %p267 = pneg %p65
        %p268 = pneg %p89
        %p269 = pneg %p86
        %p270 = pneg %p110
        %p271 = pneg %p107
        %p272 = pneg %p131
        %p273 = pneg %p128
        %p274 = pneg %p152
        %p275 = pneg %p149
        %p276 = pneg %p173
        %p277 = pneg %p170
        %p278 = pneg %p199
        %p279 = pneg %p196
        %s280 = sand.u32 %s186, 1
        %s281 = scalar_lea.sflag [#allocation3], %s280
        %s282 = sand.u32 %s186, 1
        %s283 = smul.addr %s282, 16
        %s284 = scalar_lea.vmem [#allocation2], %s283
        %p285 = scmp.lt.s32.totalorder %s21, 1
        %s286 = scalar_select %p285, %s21, 1
        %s287 = smul.addr %s286, 8
        %s288 = scalar_lea.vmem %s0, %s287
        %p289 = scmp.lt.s32.totalorder %s21, 1
        %s290 = scalar_select %p289, %s21, 1
        %s291 = smul.addr %s290, 2
        %s292 = smul.addr %s291, 8
        %s293 = scalar_lea.vmem %s1, %s292
        %v294 = vld [vmem:[%s288] sm:$0xff]
        %v295 = vld [vmem:[%s293] sm:$0xff]
        %v296 = vld [vmem:[%s293 + $0x8] sm:$0xff]
        %v297 = vld [vmem:[%s2] sm:$0xff]
        %v298 = vld [vmem:[%s2 + $0x8] sm:$0xff]
        %v299 = vld [vmem:[%s2 + $0x10] sm:$0xff]
        %v300 = vld [vmem:[%s2 + $0x18] sm:$0xff]
        %v301 = vld [vmem:[%s3] sm:$0xff]
        %v302 = vld [vmem:[%s3 + $0x8] sm:$0xff]
        %v303 = vld [vmem:[%s3 + $0x10] sm:$0xff]
        %v304 = vld [vmem:[%s3 + $0x18] sm:$0xff]
        %v305 = vld [vmem:[%s3 + $0x20] sm:$0xff]
        %v306 = vld [vmem:[%s3 + $0x28] sm:$0xff]
        %v307 = vld [vmem:[%s3 + $0x30] sm:$0xff]
        %v308 = vld [vmem:[%s3 + $0x38] sm:$0xff]
        %v309 = vld [vmem:[%s3 + $0x40] sm:$0xff]
        %v310 = vld [vmem:[%s3 + $0x48] sm:$0xff]
        %v311 = vld [vmem:[%s3 + $0x50] sm:$0xff]
        %v312 = vld [vmem:[%s3 + $0x58] sm:$0xff]
        %v313 = vld [vmem:[%s3 + $0x60] sm:$0xff]
        %v314 = vld [vmem:[%s3 + $0x68] sm:$0xff]
        %v315 = vld [vmem:[%s3 + $0x70] sm:$0xff]
        %v316 = vld [vmem:[%s3 + $0x78] sm:$0xff]
        %v317 = vld [vmem:[%s3 + $0x80] sm:$0xff]
        %v318 = vld [vmem:[%s3 + $0x88] sm:$0xff]
        %vm319 = vcmask 130048
        %v321 = vsel %vm319, %v296, 0
        %323 = vmatprep.subr.mxu0 0.0
        %324 = vmatpush1.msra.mxu0 %v316
        %325 = vmatprep.subr.mxu0 0.0
        %326 = vmatpush1.msra.mxu0 %v315
        %327 = vmatprep.subr.mxu0 0.0
        %328 = vmatpush1.msra.mxu0 %v314
        %329 = vmatprep.subr.mxu0 0.0
        %330 = vmatpush1.msra.mxu0 %v313
        %331 = vmatprep.subr.mxu0 0.0
        %332 = vmatpush1.msra.mxu0 %v312
        %333 = vmatprep.subr.mxu0 0.0
        %334 = vmatpush1.msra.mxu0 %v311
        %335 = vmatprep.subr.mxu0 0.0
        %336 = vmatpush1.msra.mxu0 %v310
        %337 = vmatprep.subr.mxu0 0.0
        %338 = vmatpush1.msra.mxu0 %v309
        %339 = vmatprep.subr.mxu0 0.0
        %340 = vmatpush1.msra.mxu0 %v308
        %341 = vmatprep.subr.mxu0 0.0
        %342 = vmatpush1.msra.mxu0 %v307
        %343 = vmatprep.subr.mxu0 0.0
        %344 = vmatpush1.msra.mxu0 %v306
        %345 = vmatprep.subr.mxu0 0.0
        %346 = vmatpush1.msra.mxu0 %v305
        %347 = vmatprep.subr.mxu0 0.0
        %348 = vmatpush1.msra.mxu0 %v304
        %349 = vmatprep.subr.mxu0 0.0
        %350 = vmatpush1.msra.mxu0 %v303
        %351 = vmatprep.subr.mxu0 0.0
        %352 = vmatpush1.msra.mxu0 %v302
        %353 = vmatprep.subr.mxu0 0.0
        %354 = vmatpush1.msra.mxu0 %v301
        %355 = vmatprep.subr.mxu0 0.0
        %356 = vmatpush2.msra.mxu0 0.0
        %357 = vmatprep.subr.mxu0 0.0
        %358 = vmatpush2.msra.mxu0 0.0
        %359 = vmatprep.subr.mxu0 0.0
        %360 = vmatpush2.msra.mxu0 0.0
        %361 = vmatprep.subr.mxu0 0.0
        %362 = vmatpush2.msra.mxu0 0.0
        %363 = vmatprep.subr.mxu0 0.0
        %364 = vmatpush2.msra.mxu0 0.0
        %365 = vmatprep.subr.mxu0 0.0
        %366 = vmatpush2.msra.mxu0 0.0
        %367 = vmatprep.subr.mxu0 0.0
        %368 = vmatpush2.msra.mxu0 0.0
        %369 = vmatprep.subr.mxu0 0.0
        %370 = vmatpush2.msra.mxu0 0.0
        %371 = vmatprep.subr.mxu0 0.0
        %372 = vmatpush2.msra.mxu0 0.0
        %373 = vmatprep.subr.mxu0 0.0
        %374 = vmatpush2.msra.mxu0 0.0
        %375 = vmatprep.subr.mxu0 0.0
        %376 = vmatpush2.msra.mxu0 0.0
        %377 = vmatprep.subr.mxu0 0.0
        %378 = vmatpush2.msra.mxu0 0.0
        %379 = vmatprep.subr.mxu0 0.0
        %380 = vmatpush2.msra.mxu0 0.0
        %381 = vmatprep.subr.mxu0 0.0
        %382 = vmatpush2.msra.mxu0 0.0
        %383 = vmatprep.subr.mxu0 0.0
        %384 = vmatpush2.msra.mxu0 %v318
        %385 = vmatprep.subr.mxu0 0.0
        %386 = vmatpush2.msra.mxu0 %v317
        %387 = vmatprep.mubr.f32.mxu0 %v321
        %388 = vmatmul.mubr.f32.gmra.mxu0 %v295
        %v389 = vpop.f32.mrf.mxu0
        %v390 = vadd.f32 0.0, %v389
        %v391 = vpop.f32.mrf.mxu0
        %392 = vdwg.mxu0
        %vm393 = vcmask 261120
        %v395 = vsel %vm393, %v294, 0
        %397 = vmatprep.subr.mxu0 0.0
        %398 = vmatpush1.msra.mxu0 0.0
        %399 = vmatprep.subr.mxu0 0.0
        %400 = vmatpush1.msra.mxu0 0.0
        %401 = vmatprep.subr.mxu0 0.0
        %402 = vmatpush1.msra.mxu0 0.0
        %403 = vmatprep.subr.mxu0 0.0
        %404 = vmatpush1.msra.mxu0 0.0
        %405 = vmatprep.subr.mxu0 0.0
        %406 = vmatpush1.msra.mxu0 0.0
        %407 = vmatprep.subr.mxu0 0.0
        %408 = vmatpush1.msra.mxu0 0.0
        %409 = vmatprep.subr.mxu0 0.0
        %410 = vmatpush1.msra.mxu0 0.0
        %411 = vmatprep.subr.mxu0 0.0
        %412 = vmatpush1.msra.mxu0 0.0
        %413 = vmatprep.subr.mxu0 0.0
        %414 = vmatpush1.msra.mxu0 0.0
        %415 = vmatprep.subr.mxu0 0.0
        %416 = vmatpush1.msra.mxu0 0.0
        %417 = vmatprep.subr.mxu0 0.0
        %418 = vmatpush1.msra.mxu0 0.0
        %419 = vmatprep.subr.mxu0 0.0
        %420 = vmatpush1.msra.mxu0 0.0
        %421 = vmatprep.subr.mxu0 0.0
        %422 = vmatpush1.msra.mxu0 %v300
        %423 = vmatprep.subr.mxu0 0.0
        %424 = vmatpush1.msra.mxu0 %v299
        %425 = vmatprep.subr.mxu0 0.0
        %426 = vmatpush1.msra.mxu0 %v298
        %427 = vmatprep.subr.mxu0 0.0
        %428 = vmatpush1.msra.mxu0 %v297
        %429 = vmatprep.subr.mxu0 0.0
        %430 = vmatpush2.msra.mxu0 0.0
        %431 = vmatprep.subr.mxu0 0.0
        %432 = vmatpush2.msra.mxu0 0.0
        %433 = vmatprep.subr.mxu0 0.0
        %434 = vmatpush2.msra.mxu0 0.0
        %435 = vmatprep.subr.mxu0 0.0
        %436 = vmatpush2.msra.mxu0 0.0
        %437 = vmatprep.subr.mxu0 0.0
        %438 = vmatpush2.msra.mxu0 0.0
        %439 = vmatprep.subr.mxu0 0.0
        %440 = vmatpush2.msra.mxu0 0.0
        %441 = vmatprep.subr.mxu0 0.0
        %442 = vmatpush2.msra.mxu0 0.0
        %443 = vmatprep.subr.mxu0 0.0
        %444 = vmatpush2.msra.mxu0 0.0
        %445 = vmatprep.subr.mxu0 0.0
        %446 = vmatpush2.msra.mxu0 0.0
        %447 = vmatprep.subr.mxu0 0.0
        %448 = vmatpush2.msra.mxu0 0.0
        %449 = vmatprep.subr.mxu0 0.0
        %450 = vmatpush2.msra.mxu0 0.0
        %451 = vmatprep.subr.mxu0 0.0
        %452 = vmatpush2.msra.mxu0 0.0
        %453 = vmatprep.subr.mxu0 0.0
        %454 = vmatpush2.msra.mxu0 0.0
        %455 = vmatprep.subr.mxu0 0.0
        %456 = vmatpush2.msra.mxu0 0.0
        %457 = vmatprep.subr.mxu0 0.0
        %458 = vmatpush2.msra.mxu0 0.0
        %459 = vmatprep.subr.mxu0 0.0
        %460 = vmatpush2.msra.mxu0 0.0
        %461 = vmatprep.mubr.f32.mxu0 0.0
        %462 = vmatmul.mubr.f32.gmra.mxu0 %v395
        %v463 = vpop.f32.mrf.mxu0
        %v464 = vadd.f32 %v390, %v463
        %v465 = vpop.f32.mrf.mxu0
        %466 = vdwg.mxu0
        %v467 = vld [vmem:[%s4] sm:$0x1]
        %v469 = vlaneseq
        %v470 = vshrl.u32 %v469, 7
        %v471 = vsub.s32 0, %v470
        %v472 = vrot.slane %v467, %v471
        %v474 = vadd.f32 %v464, %v472
        %v475 = vmul.f32 %v474, %v474
        %v476 = vmul.f32 %v474, 0.5
        %v477 = vmul.f32 %v474, 0.7978846
        %v478 = vmul.f32 %v475, 0.044715
        %v479 = vadd.f32 %v478, 1.0
        %v480 = vmul.f32 %v477, %v479
        %v481 = vtanh.pop %v480
        %v482 = vadd.f32 %v481, 1.0
        %v483 = vmul.f32 %v476, %v482
        %v484 = vld [vmem:[%s5] sm:$0xff]
        %v485 = vld [vmem:[%s5 + $0x8] sm:$0xff]
        %v486 = vld [vmem:[%s5 + $0x10] sm:$0xff]
        %v487 = vld [vmem:[%s5 + $0x18] sm:$0xff]
        %v488 = vld [vmem:[%s5 + $0x20] sm:$0xff]
        %v489 = vld [vmem:[%s5 + $0x28] sm:$0xff]
        %v490 = vld [vmem:[%s5 + $0x30] sm:$0xff]
        %v491 = vld [vmem:[%s5 + $0x38] sm:$0xff]
        %v492 = vld [vmem:[%s5 + $0x40] sm:$0xff]
        %v493 = vld [vmem:[%s5 + $0x48] sm:$0xff]
        %v494 = vld [vmem:[%s5 + $0x50] sm:$0xff]
        %v495 = vld [vmem:[%s5 + $0x58] sm:$0xff]
        %v496 = vld [vmem:[%s5 + $0x60] sm:$0xff]
        %v497 = vld [vmem:[%s5 + $0x68] sm:$0xff]
        %v498 = vld [vmem:[%s5 + $0x70] sm:$0xff]
        %v499 = vld [vmem:[%s5 + $0x78] sm:$0xff]
        %v500 = vld [vmem:[%s6] sm:$0x3]
        %v502 = vlaneseq
        %v503 = vshrl.u32 %v502, 7
        %v504 = vsub.s32 0, %v503
        %v505 = vrot.slane %v500, %v504
        %v506 = vlaneseq
        %v507 = vshrl.u32 %v506, 7
        %v508 = vsub.s32 1, %v507
        %v509 = vrot.slane %v500, %v508
        %vm512 = vcmask 523264
        %v514 = vsel %vm512, %v483, 0
        %516 = vmatprep.subr.mxu0 0.0
        %517 = vmatpush1.msra.mxu0 0.0
        %518 = vmatprep.subr.mxu0 0.0
        %519 = vmatpush1.msra.mxu0 0.0
        %520 = vmatprep.subr.mxu0 0.0
        %521 = vmatpush1.msra.mxu0 0.0
        %522 = vmatprep.subr.mxu0 0.0
        %523 = vmatpush1.msra.mxu0 0.0
        %524 = vmatprep.subr.mxu0 0.0
        %525 = vmatpush1.msra.mxu0 0.0
        %526 = vmatprep.subr.mxu0 0.0
        %527 = vmatpush1.msra.mxu0 0.0
        %528 = vmatprep.subr.mxu0 0.0
        %529 = vmatpush1.msra.mxu0 0.0
        %530 = vmatprep.subr.mxu0 0.0
        %531 = vmatpush1.msra.mxu0 0.0
        %532 = vmatprep.subr.mxu0 %v499
        %533 = vmatpush1.msra.mxu0 %v498
        %534 = vmatprep.subr.mxu0 %v497
        %535 = vmatpush1.msra.mxu0 %v496
        %536 = vmatprep.subr.mxu0 %v495
        %537 = vmatpush1.msra.mxu0 %v494
        %538 = vmatprep.subr.mxu0 %v493
        %539 = vmatpush1.msra.mxu0 %v492
        %540 = vmatprep.subr.mxu0 %v491
        %541 = vmatpush1.msra.mxu0 %v490
        %542 = vmatprep.subr.mxu0 %v489
        %543 = vmatpush1.msra.mxu0 %v488
        %544 = vmatprep.subr.mxu0 %v487
        %545 = vmatpush1.msra.mxu0 %v486
        %546 = vmatprep.subr.mxu0 %v485
        %547 = vmatpush1.msra.mxu0 %v484
        %548 = vmatprep.subr.mxu0 0.0
        %549 = vmatpush2.msra.mxu0 0.0
        %550 = vmatprep.subr.mxu0 0.0
        %551 = vmatpush2.msra.mxu0 0.0
        %552 = vmatprep.subr.mxu0 0.0
        %553 = vmatpush2.msra.mxu0 0.0
        %554 = vmatprep.subr.mxu0 0.0
        %555 = vmatpush2.msra.mxu0 0.0
        %556 = vmatprep.subr.mxu0 0.0
        %557 = vmatpush2.msra.mxu0 0.0
        %558 = vmatprep.subr.mxu0 0.0
        %559 = vmatpush2.msra.mxu0 0.0
        %560 = vmatprep.subr.mxu0 0.0
        %561 = vmatpush2.msra.mxu0 0.0
        %562 = vmatprep.subr.mxu0 0.0
        %563 = vmatpush2.msra.mxu0 0.0
        %564 = vmatprep.subr.mxu0 0.0
        %565 = vmatpush2.msra.mxu0 0.0
        %566 = vmatprep.subr.mxu0 0.0
        %567 = vmatpush2.msra.mxu0 0.0
        %568 = vmatprep.subr.mxu0 0.0
        %569 = vmatpush2.msra.mxu0 0.0
        %570 = vmatprep.subr.mxu0 0.0
        %571 = vmatpush2.msra.mxu0 0.0
        %572 = vmatprep.subr.mxu0 0.0
        %573 = vmatpush2.msra.mxu0 0.0
        %574 = vmatprep.subr.mxu0 0.0
        %575 = vmatpush2.msra.mxu0 0.0
        %576 = vmatprep.subr.mxu0 0.0
        %577 = vmatpush2.msra.mxu0 0.0
        %578 = vmatprep.subr.mxu0 0.0
        %579 = vmatpush2.msra.mxu0 0.0
        %580 = vmatprep.mubr.f32.mxu0 0.0
        %581 = vmatmul.mubr.f32.gmra.mxu0 %v514
        %v582 = vpop.f32.mrf.mxu0
        %v583 = vadd.f32 %v505, %v582
        %v584 = vpop.f32.mrf.mxu0
        %v585 = vadd.f32 %v509, %v584
        %586 = vdwg.mxu0
        %v587 = vadd.f32 %v295, %v583
        %v588 = vadd.f32 %v296, %v585
        %589 = vst [vmem:[%s284] sm:$0xff] %v587
        %590 = vst.msk [vmem:[%s284 + $0x8] sm:$0xff] %vm319, %v588
        %s591 = sand.u32 %s186, 1
        %s592 = scalar_lea.sflag [#allocation3], %s591
        %s593 = sand.u32 %s186, 1
        %s594 = smul.addr %s593, 16
        %s595 = scalar_lea.vmem [#allocation2], %s594
        // Predicated region
        $region49: #{tpu_custom_call.1} parent=47 // pred_check
          %p596 = pneg %p196
        $region50: #{tpu_custom_call.1} parent=47 // pred_check_branch
          %598 = sbr.rel (%p596) target = $region52
        $region51: #{tpu_custom_call.1} parent=47 // pred_region
          %s600 = ssub.s32 256, 256
          %601 = vsyncadd %s592, %s600
          %s602 = smul.addr %s21, 2
          %s603 = smul.addr %s602, 128
          %s604 = scalar_lea.hbm %s7, %s603
          %s606 = sshll.u32 %s595, 4
          %s607 = int_to_ptr.vmem [resolvable:$true] %s606
          %609 = dma.vmem_to_hbm [thread:$0]  %s607, 256, %s604, %s592
        $region52: #{tpu_custom_call.1} parent=47 // pred_fallthru
          _
      $region48: #{tpu_custom_call.1} parent=5 // pred_fallthru
        _
      %p610 = scmp.le.s32.totalorder 2, %s16
      // Predicated region
      $region53: #{tpu_custom_call.1} parent=5 // pred_check
        %p611 = pneg %p610
      $region54: #{tpu_custom_call.1} parent=5 // pred_check_branch
        %613 = sbr.rel (%p611) target = $region56
      $region55: #{tpu_custom_call.1} parent=5 // pred_region
        %s614 = ssub.s32 %s16, 2
        // Predicated region
        $region57: #{tpu_custom_call.1} parent=55 // pred_check
          %p615 = pneg %p202
        $region58: #{tpu_custom_call.1} parent=55 // pred_check_branch
          %617 = sbr.rel (%p615) target = $region60
        $region59: #{tpu_custom_call.1} parent=55 // pred_region
          %s618 = sand.u32 %s187, 1
          %s619 = scalar_lea.sflag [#allocation3], %s618
          %s620 = sand.u32 %s187, 1
          %s621 = smul.addr %s620, 16
          %s622 = scalar_lea.vmem [#allocation2], %s621
          %623 = dma.done %s619, 256
        $region60: #{tpu_custom_call.1} parent=55 // pred_fallthru
          _
      $region56: #{tpu_custom_call.1} parent=5 // pred_fallthru
        _
    $region6: #{tpu_custom_call.1} parent=1 // loop_footer
      %s20 = sadd.s32 1, %s16
    $region7: #{tpu_custom_call.1} parent=1 // loop_footer_branch
      %15 = sbr.rel target = $region3
    $region8: #{tpu_custom_call.1} parent=1 // loop_exit
      _
    %624 = vsyncpa [#allocation3], 1
    %s625 = scalar_lea.sflag [#allocation3], 1
    %626 = vsyncpa %s625, 1

</llo_original>
